<compile_context>
chip_gen: v5e
topology: v5e:2x2
jax: 0.10.0
libtpu: 0.0.40
codegen_flags: <defaults>
</compile_context>

<pallas_src>
import math
from functools import partial

import jax
import jax.numpy as jnp
from jax.experimental import pallas as pl
from jax.experimental.pallas import tpu as pltpu


# ----------------------------------------------------------------------------
# Kernel: flash attention over precomputed theta / phi / g
# ----------------------------------------------------------------------------
def _nl_attn_kernel(th_ref,   # (1, tq, Kp) compute dtype
                    ph_ref,   # (1, tk, Kp) compute dtype
                    g_ref,    # (1, tk, Kp) compute dtype
                    o_ref,    # (1, tq, Kp) f32
                    m_s,      # VMEM (tq, 1)  f32 running max
                    l_s,      # VMEM (tq, 1)  f32 running denom
                    acc_s,    # VMEM (tq, Kp) f32 un-normalized y
                    *, n_valid, tk, need_mask):
    ki = pl.program_id(2)
    cdt = th_ref.dtype

    @pl.when(ki == 0)
    def _init():
        m_s[...] = jnp.full(m_s.shape, -jnp.inf, dtype=m_s.dtype)
        l_s[...] = jnp.zeros(l_s.shape, dtype=l_s.dtype)
        acc_s[...] = jnp.zeros(acc_s.shape, dtype=acc_s.dtype)

    th = th_ref[0]                                                  # (tq, Kp)
    ph = ph_ref[0]                                                  # (tk, Kp)

    # scores = theta @ phi^T; the transpose is absorbed into the contraction.
    s = jax.lax.dot_general(th, ph,
                            dimension_numbers=(((1,), (1,)), ((), ())),
                            preferred_element_type=jnp.float32)     # (tq, tk)

    if need_mask:
        # Mask keys beyond the true sequence length (zero-padded phi/g rows).
        key_idx = ki * tk + jax.lax.broadcasted_iota(jnp.int32, (1, tk), 1)
        s = jnp.where(key_idx < n_valid, s, -1e30)

    # Online-softmax update (m/l/acc in f32; exp in the compute dtype so the
    # v6e/v7x bf16 EUP path is used when compute_dtype == bfloat16).
    m_prev = m_s[...]
    m_new = jnp.maximum(m_prev, jnp.max(s, axis=-1, keepdims=True))
    alpha = jnp.exp(m_prev - m_new)                                  # (tq, 1)
    p = jnp.exp((s - m_new).astype(cdt))                             # (tq, tk)
    l_s[...] = alpha * l_s[...] + jnp.sum(p, axis=-1, keepdims=True,
                                          dtype=jnp.float32)
    acc_s[...] = alpha * acc_s[...] + jnp.dot(
        p, g_ref[0], preferred_element_type=jnp.float32)
    m_s[...] = m_new

    @pl.when(ki == pl.num_programs(2) - 1)
    def _finalize():
        # Deferred softmax normalization: scale only the (tq, Kp) accumulator.
        o_ref[0] = (acc_s[...] * pl.reciprocal(l_s[...], approx=True)
                    ).astype(o_ref.dtype)


# ----------------------------------------------------------------------------
# Wrapper
# ----------------------------------------------------------------------------
def _round_up(x, m):
    return ((x + m - 1) // m) * m


def _pad_to(a, target_shape):
    pads = [(0, t - s) for s, t in zip(a.shape, target_shape)]
    if all(p == (0, 0) for p in pads):
        return a
    return jnp.pad(a, pads)


def _default_tile_cap():
    """Bigger tiles on 128 MiB-VMEM parts (v5e/v6e); 512 on 64 MiB v7x."""
    try:
        kind = jax.devices()[0].device_kind.lower()
    except Exception:  # pragma: no cover
        return 512
    if "v7" in kind:
        return 512
    if "v5" in kind or "v6" in kind:
        return 1024
    return 512


def _vmem_estimate(tq, tk, kp, in_bytes):
    """Rough VMEM need: double-buffered tiles + scratch + score temporaries."""
    tiles = 2 * (tq * kp * in_bytes           # theta
                 + 2 * tk * kp * in_bytes     # phi + g
                 + tq * kp * 4)               # output (f32)
    scratch = tq * kp * 4 + 2 * tq * 128 * 4  # acc + m/l (lane-padded)
    temps = 6 * tq * tk * 4                   # s, p, where/cast temporaries
    return tiles + scratch + temps


def non_local_block(x_nchw, params, *, tq=None, tk=None,
                    compute_dtype=jnp.bfloat16, kv_buffers=None):
    """x_nchw: (B, Cin, H, W). params: dict from init_params.

    compute_dtype: dtype fed to the MXU / per-step exp (bf16 default; pass
    jnp.float32 for tighter parity with an f32 reference).  Accumulation and
    softmax statistics are always f32.
    kv_buffers: optional pipeline depth for the phi/g stream (e.g. 3 on v5e
    if the kv DMA is exposed in the trace); default is the 2-deep pipeline.
    """
    B, Cin, H, W = x_nchw.shape
    N = H * W
    Cout = params["wg"].shape[1]
    Kp = _round_up(Cout, 128)

    # ---- 1x1 projections as one fused XLA GEMM: x @ [wt | wp | wg] ----------
    xf = jnp.transpose(x_nchw, (0, 2, 3, 1)).reshape(B, N, Cin)
    xf32 = xf.astype(jnp.float32)
    w_tpg = jnp.concatenate([params["wt"], params["wp"], params["wg"]], axis=1)
    b_tpg = jnp.concatenate([params["bt"], params["bp"], params["bg"]], axis=1)
    tpg = xf32 @ w_tpg + b_tpg                          # (B, N, 3*Cout) f32
    theta, phi, g = jnp.split(tpg, 3, axis=-1)

    # ---- tile selection & padding -------------------------------------------
    if tq is None or tk is None:
        t = min(_default_tile_cap(), _round_up(N, 128))
        tq = t if tq is None else tq
        tk = t if tk is None else tk
    assert tq % 8 == 0 and tk % 8 == 0, (tq, tk)
    Np = _round_up(N, math.lcm(tq, tk))                 # pad N to tile multiple
    nq, nk = Np // tq, Np // tk

    def prep(a):
        # Zero-pad N -> Np and Cout -> Kp (padded theta/phi lanes contribute 0
        # to the scores; padded g lanes produce 0 output lanes, sliced off).
        return _pad_to(a, (B, Np, Kp)).astype(compute_dtype)

    theta_p, phi_p, g_p = prep(theta), prep(phi), prep(g)

    in_bytes = jnp.dtype(compute_dtype).itemsize
    vmem_limit = int(min(max(2 * _vmem_estimate(tq, tk, Kp, in_bytes),
                             32 << 20), 96 << 20))

    kv_kwargs = {}
    if kv_buffers is not None:
        kv_kwargs["pipeline_mode"] = pl.Buffered(kv_buffers)

    flops = int(2 * B * 2 * Np * Np * Kp)               # scores + p@g
    transcendentals = int(B * Np * Np)
    bytes_accessed = int(B * Np * Kp * in_bytes * (1 + 2 * nq)
                         + B * Np * Kp * 4)

    y_padded = pl.pallas_call(
        partial(_nl_attn_kernel, n_valid=N, tk=tk, need_mask=(Np != N)),
        out_shape=jax.ShapeDtypeStruct((B, Np, Kp), jnp.float32),
        grid_spec=pltpu.PrefetchScalarGridSpec(
            num_scalar_prefetch=0,
            grid=(B, nq, nk),
            in_specs=[
                pl.BlockSpec((1, tq, Kp), lambda b, qi, ki: (b, qi, 0)),  # theta
                pl.BlockSpec((1, tk, Kp), lambda b, qi, ki: (b, ki, 0),
                             **kv_kwargs),                                # phi
                pl.BlockSpec((1, tk, Kp), lambda b, qi, ki: (b, ki, 0),
                             **kv_kwargs),                                # g
            ],
            out_specs=pl.BlockSpec((1, tq, Kp), lambda b, qi, ki: (b, qi, 0)),
            scratch_shapes=[
                pltpu.VMEM((tq, 1), jnp.float32),    # m (running max)
                pltpu.VMEM((tq, 1), jnp.float32),    # l (running denom)
                pltpu.VMEM((tq, Kp), jnp.float32),   # acc (un-normalized y)
            ],
        ),
        compiler_params=pltpu.CompilerParams(
            dimension_semantics=("parallel", "parallel", "arbitrary"),
            vmem_limit_bytes=vmem_limit,
        ),
        cost_estimate=pl.CostEstimate(
            flops=flops,
            transcendentals=transcendentals,
            bytes_accessed=bytes_accessed,
        ),
    )(theta_p, phi_p, g_p)

    # ---- W projection + residual (plain XLA) ---------------------------------
    y = y_padded[:, :N, :Cout]                          # drop padded rows/lanes
    z = y @ params["ww"] + params["bw"] + xf32          # (B, N, Cin)
    z = z.astype(x_nchw.dtype)
    return jnp.transpose(z.reshape(B, H, W, Cin), (0, 3, 1, 2))


# ----------------------------------------------------------------------------
# Parameter init (mirrors the PyTorch module) + pure-JAX reference
# ----------------------------------------------------------------------------
def init_params(key, in_channel, out_channel):
    """Synthetic init mirroring the module's parameter shapes.

    PyTorch conv weight shape is (out, in, 1, 1); here we store the equivalent
    matmul weight of shape (in, out) (i.e. conv_weight[:, :, 0, 0].T).
    W (the output projection) is zero-initialized exactly as in the module.
    """
    kg, kt, kp, kbg, kbt, kbp = jax.random.split(key, 6)
    scale = 0.1
    return {
        "wg": scale * jax.random.normal(kg, (in_channel, out_channel), jnp.float32),
        "bg": scale * jax.random.normal(kbg, (1, out_channel), jnp.float32),
        "wt": scale * jax.random.normal(kt, (in_channel, out_channel), jnp.float32),
        "bt": scale * jax.random.normal(kbt, (1, out_channel), jnp.float32),
        "wp": scale * jax.random.normal(kp, (in_channel, out_channel), jnp.float32),
        "bp": scale * jax.random.normal(kbp, (1, out_channel), jnp.float32),
        # nn.init.constant_(W.weight, 0); nn.init.constant_(W.bias, 0)
        "ww": jnp.zeros((out_channel, in_channel), jnp.float32),
        "bw": jnp.zeros((1, in_channel), jnp.float32),
    }


def _reference(x_nchw, params):
    """Pure-JAX reference of the PyTorch forward."""
    B, Cin, H, W = x_nchw.shape
    N = H * W
    xf = jnp.transpose(x_nchw, (0, 2, 3, 1)).reshape(B, N, Cin)
    g = xf @ params["wg"] + params["bg"]
    th = xf @ params["wt"] + params["bt"]
    ph = xf @ params["wp"] + params["bp"]
    f1 = jnp.einsum("bnc,bmc->bnm", th, ph)
    f = jax.nn.softmax(f1, axis=-1)
    y = jnp.einsum("bnm,bmc->bnc", f, g)
    wy = y @ params["ww"] + params["bw"]
    z = wy + xf
    return jnp.transpose(z.reshape(B, H, W, Cin), (0, 3, 1, 2))


if __name__ == "__main__":
    key = jax.random.PRNGKey(0)
    kx, kp, kw, kb, kx2 = jax.random.split(key, 5)

    B, Cin, Cout, H, Wd = 2, 4, 4, 16, 16
    x = jax.random.normal(kx, (B, Cin, H, Wd), jnp.float32)
    params = init_params(kp, Cin, Cout)
    # The module zero-initializes W (output would trivially equal x); override
    # with small random values so the test exercises the full attention path.
    params["ww"] = 0.1 * jax.random.normal(kw, (Cout, Cin), jnp.float32)
    params["bw"] = 0.1 * jax.random.normal(kb, (1, Cin), jnp.float32)

    ref = _reference(x, params)

    # Default bf16-compute path (v6e/v7x fast path); tq=tk=64 forces a
    # (2, 4, 4) grid so the online softmax across kv tiles is exercised.
    out_bf16 = non_local_block(x, params, tq=64, tk=64)
    out_bf16 = jax.block_until_ready(out_bf16)
    assert out_bf16.shape == x.shape
    assert jnp.allclose(out_bf16, ref, atol=5e-2, rtol=5e-2), float(
        jnp.max(jnp.abs(out_bf16 - ref)))

    # f32 compute path (tighter parity).
    out_f32 = non_local_block(x, params, tq=64, tk=64,
                              compute_dtype=jnp.float32)
    out_f32 = jax.block_until_ready(out_f32)
    assert jnp.allclose(out_f32, ref, atol=2e-3, rtol=2e-3), float(
        jnp.max(jnp.abs(out_f32 - ref)))

    # Non-divisible spatial size (N = 225): exercises N-padding + key masking.
    x2 = jax.random.normal(kx2, (1, Cin, 15, 15), jnp.float32)
    ref2 = _reference(x2, params)
    out2 = non_local_block(x2, params, tq=128, tk=128,
                           compute_dtype=jnp.float32)
    out2 = jax.block_until_ready(out2)
    assert jnp.allclose(out2, ref2, atol=2e-3, rtol=2e-3), float(
        jnp.max(jnp.abs(out2 - ref2)))

    print("KERNEL_OK")
</pallas_src>

<mosaic_0001>
module attributes {stable_mosaic.version = 11 : i64} {
  func.func @_nl_attn_kernel(%arg0: i32, %arg1: i32, %arg2: i32, %arg3: memref<1x64x128xbf16, #tpu.memory_space<vmem>>, %arg4: memref<1x64x128xbf16, #tpu.memory_space<vmem>>, %arg5: memref<1x64x128xbf16, #tpu.memory_space<vmem>>, %arg6: memref<1x64x128xf32, #tpu.memory_space<vmem>>, %arg7: memref<64x1xf32, #tpu.memory_space<vmem>>, %arg8: memref<64x1xf32, #tpu.memory_space<vmem>>, %arg9: memref<64x128xf32, #tpu.memory_space<vmem>>) attributes {dimension_semantics = [#tpu.dimension_semantics<parallel>, #tpu.dimension_semantics<parallel>, #tpu.dimension_semantics<arbitrary>], iteration_bounds = array<i64: 2, 4, 4>, scalar_prefetch = 0 : i64, scratch_operands = 3 : i64, tpu.core_type = #tpu.core_type<tc>, window_params = [{transform_indices = @transform_0, window_bounds = array<i64: 1, 64, 128>}, {transform_indices = @transform_1, window_bounds = array<i64: 1, 64, 128>}, {transform_indices = @transform_2, window_bounds = array<i64: 1, 64, 128>}, {transform_indices = @transform_3, window_bounds = array<i64: 1, 64, 128>}]} {
    %c0_i32 = arith.constant 0 : i32
    %0 = arith.cmpi eq, %arg2, %c0_i32 : i32
    %1 = arith.extui %0 : i1 to i32
    %c0_i32_0 = arith.constant 0 : i32
    %2 = arith.cmpi ne, %1, %c0_i32_0 : i32
    scf.if %2 {
      %cst_25 = arith.constant 0xFF800000 : f32
      %37 = vector.broadcast %cst_25 : f32 to vector<64x1xf32>
      %c0_26 = arith.constant 0 : index
      %c0_27 = arith.constant 0 : index
      %38 = vector.load %arg7[%c0_26, %c0_27] : memref<64x1xf32, #tpu.memory_space<vmem>>, vector<64x1xf32>
      tpu.vector_store %arg7[%c0_26, %c0_27], %37 {strides = array<i32>} : memref<64x1xf32, #tpu.memory_space<vmem>>, vector<64x1xf32>,
      %cst_28 = arith.constant 0.000000e+00 : f32
      %39 = vector.broadcast %cst_28 : f32 to vector<64x1xf32>
      %c0_29 = arith.constant 0 : index
      %c0_30 = arith.constant 0 : index
      %40 = vector.load %arg8[%c0_29, %c0_30] : memref<64x1xf32, #tpu.memory_space<vmem>>, vector<64x1xf32>
      tpu.vector_store %arg8[%c0_29, %c0_30], %39 {strides = array<i32>} : memref<64x1xf32, #tpu.memory_space<vmem>>, vector<64x1xf32>,
      %cst_31 = arith.constant 0.000000e+00 : f32
      %41 = vector.broadcast %cst_31 : f32 to vector<64x128xf32>
      %c0_32 = arith.constant 0 : index
      %c0_33 = arith.constant 0 : index
      %42 = vector.load %arg9[%c0_32, %c0_33] : memref<64x128xf32, #tpu.memory_space<vmem>>, vector<64x128xf32>
      tpu.vector_store %arg9[%c0_32, %c0_33], %41 {strides = array<i32>} : memref<64x128xf32, #tpu.memory_space<vmem>>, vector<64x128xf32>,
    } else {
    }
    %c0 = arith.constant 0 : index
    %c0_1 = arith.constant 0 : index
    %c0_2 = arith.constant 0 : index
    %3 = vector.load %arg3[%c0, %c0_1, %c0_2] : memref<1x64x128xbf16, #tpu.memory_space<vmem>>, vector<1x64x128xbf16>
    %4 = vector.shape_cast %3 : vector<1x64x128xbf16> to vector<64x128xbf16>
    %c0_3 = arith.constant 0 : index
    %c0_4 = arith.constant 0 : index
    %c0_5 = arith.constant 0 : index
    %5 = vector.load %arg4[%c0_3, %c0_4, %c0_5] : memref<1x64x128xbf16, #tpu.memory_space<vmem>>, vector<1x64x128xbf16>
    %6 = vector.shape_cast %5 : vector<1x64x128xbf16> to vector<64x128xbf16>
    %cst = arith.constant dense<0.000000e+00> : vector<64x64xf32>
    %7 = tpu.matmul %4, %6, %cst {dimension_numbers = #tpu.dot_dimension_numbers<[1], [1], [0], [0], [0, 0, 1, 0], [], []>} : vector<64x128xbf16>, vector<64x128xbf16>, vector<64x64xf32> -> vector<64x64xf32>
    %c0_6 = arith.constant 0 : index
    %c0_7 = arith.constant 0 : index
    %8 = vector.load %arg7[%c0_6, %c0_7] : memref<64x1xf32, #tpu.memory_space<vmem>>, vector<64x1xf32>
    %cst_8 = arith.constant dense<0xFF800000> : vector<64xf32>
    %9 = vector.multi_reduction <maximumf>, %7, %cst_8 [1] : vector<64x64xf32> to vector<64xf32>
    %10 = vector.shape_cast %9 : vector<64xf32> to vector<64x1xf32>
    %11 = arith.maximumf %8, %10 : vector<64x1xf32>
    %12 = arith.subf %8, %11 : vector<64x1xf32>
    %13 = math.exp %12 : vector<64x1xf32>
    %14 = vector.broadcast %11 : vector<64x1xf32> to vector<64x64xf32>
    %15 = arith.subf %7, %14 : vector<64x64xf32>
    %16 = arith.truncf %15 : vector<64x64xf32> to vector<64x64xbf16>
    %17 = math.exp %16 : vector<64x64xbf16>
    %c0_9 = arith.constant 0 : index
    %c0_10 = arith.constant 0 : index
    %18 = vector.load %arg8[%c0_9, %c0_10] : memref<64x1xf32, #tpu.memory_space<vmem>>, vector<64x1xf32>
    %19 = arith.mulf %13, %18 : vector<64x1xf32>
    %20 = arith.extf %17 : vector<64x64xbf16> to vector<64x64xf32>
    %cst_11 = arith.constant dense<0.000000e+00> : vector<64xf32>
    %21 = vector.multi_reduction <add>, %20, %cst_11 [1] : vector<64x64xf32> to vector<64xf32>
    %22 = vector.shape_cast %21 : vector<64xf32> to vector<64x1xf32>
    %23 = arith.addf %19, %22 : vector<64x1xf32>
    %c0_12 = arith.constant 0 : index
    %c0_13 = arith.constant 0 : index
    %24 = vector.load %arg8[%c0_12, %c0_13] : memref<64x1xf32, #tpu.memory_space<vmem>>, vector<64x1xf32>
    tpu.vector_store %arg8[%c0_12, %c0_13], %23 {strides = array<i32>} : memref<64x1xf32, #tpu.memory_space<vmem>>, vector<64x1xf32>,
    %c0_14 = arith.constant 0 : index
    %c0_15 = arith.constant 0 : index
    %25 = vector.load %arg9[%c0_14, %c0_15] : memref<64x128xf32, #tpu.memory_space<vmem>>, vector<64x128xf32>
    %26 = vector.broadcast %13 : vector<64x1xf32> to vector<64x128xf32>
    %27 = arith.mulf %26, %25 : vector<64x128xf32>
    %c0_16 = arith.constant 0 : index
    %c0_17 = arith.constant 0 : index
    %c0_18 = arith.constant 0 : index
    %28 = vector.load %arg5[%c0_16, %c0_17, %c0_18] : memref<1x64x128xbf16, #tpu.memory_space<vmem>>, vector<1x64x128xbf16>
    %29 = vector.shape_cast %28 : vector<1x64x128xbf16> to vector<64x128xbf16>
    %cst_19 = arith.constant dense<0.000000e+00> : vector<64x128xf32>
    %30 = tpu.matmul %17, %29, %cst_19 {dimension_numbers = #tpu.dot_dimension_numbers<[1], [0], [0], [1], [0, 0, 1, 1], [], []>} : vector<64x64xbf16>, vector<64x128xbf16>, vector<64x128xf32> -> vector<64x128xf32>
    %31 = arith.addf %27, %30 : vector<64x128xf32>
    %c0_20 = arith.constant 0 : index
    %c0_21 = arith.constant 0 : index
    %32 = vector.load %arg9[%c0_20, %c0_21] : memref<64x128xf32, #tpu.memory_space<vmem>>, vector<64x128xf32>
    tpu.vector_store %arg9[%c0_20, %c0_21], %31 {strides = array<i32>} : memref<64x128xf32, #tpu.memory_space<vmem>>, vector<64x128xf32>,
    %c0_22 = arith.constant 0 : index
    %c0_23 = arith.constant 0 : index
    %33 = vector.load %arg7[%c0_22, %c0_23] : memref<64x1xf32, #tpu.memory_space<vmem>>, vector<64x1xf32>
    tpu.vector_store %arg7[%c0_22, %c0_23], %11 {strides = array<i32>} : memref<64x1xf32, #tpu.memory_space<vmem>>, vector<64x1xf32>,
    %c3_i32 = arith.constant 3 : i32
    %34 = arith.cmpi eq, %arg2, %c3_i32 : i32
    %35 = arith.extui %34 : i1 to i32
    %c0_i32_24 = arith.constant 0 : i32
    %36 = arith.cmpi ne, %35, %c0_i32_24 : i32
    scf.if %36 {
      %c0_25 = arith.constant 0 : index
      %c0_26 = arith.constant 0 : index
      %37 = vector.load %arg9[%c0_25, %c0_26] : memref<64x128xf32, #tpu.memory_space<vmem>>, vector<64x128xf32>
      %c0_27 = arith.constant 0 : index
      %c0_28 = arith.constant 0 : index
      %38 = vector.load %arg8[%c0_27, %c0_28] : memref<64x1xf32, #tpu.memory_space<vmem>>, vector<64x1xf32>
      %39 = tpu.reciprocal %38 {approx = true} : vector<64x1xf32> -> vector<64x1xf32>
      %40 = vector.broadcast %39 : vector<64x1xf32> to vector<64x128xf32>
      %41 = arith.mulf %37, %40 : vector<64x128xf32>
      %c0_29 = arith.constant 0 : index
      %c0_30 = arith.constant 0 : index
      %c0_31 = arith.constant 0 : index
      %42 = vector.load %arg6[%c0_29, %c0_30, %c0_31] : memref<1x64x128xf32, #tpu.memory_space<vmem>>, vector<1x64x128xf32>
      %43 = vector.shape_cast %42 : vector<1x64x128xf32> to vector<64x128xf32>
      %44 = vector.shape_cast %41 : vector<64x128xf32> to vector<1x64x128xf32>
      tpu.vector_store %arg6[%c0_29, %c0_30, %c0_31], %44 {strides = array<i32>} : memref<1x64x128xf32, #tpu.memory_space<vmem>>, vector<1x64x128xf32>,
    } else {
    }
    return
  }
  func.func @transform_0(%arg0: i32, %arg1: i32, %arg2: i32) -> (i32, i32, i32) {
    %c0_i32 = arith.constant 0 : i32
    %c0_i32_0 = arith.constant 0 : i32
    return %arg0, %arg1, %c0_i32 : i32, i32, i32
  }
  func.func @transform_1(%arg0: i32, %arg1: i32, %arg2: i32) -> (i32, i32, i32) {
    %c0_i32 = arith.constant 0 : i32
    %c0_i32_0 = arith.constant 0 : i32
    return %arg0, %arg2, %c0_i32 : i32, i32, i32
  }
  func.func @transform_2(%arg0: i32, %arg1: i32, %arg2: i32) -> (i32, i32, i32) {
    %c0_i32 = arith.constant 0 : i32
    %c0_i32_0 = arith.constant 0 : i32
    return %arg0, %arg2, %c0_i32 : i32, i32, i32
  }
  func.func @transform_3(%arg0: i32, %arg1: i32, %arg2: i32) -> (i32, i32, i32) {
    %c0_i32 = arith.constant 0 : i32
    %c0_i32_0 = arith.constant 0 : i32
    return %arg0, %arg1, %c0_i32 : i32, i32, i32
  }
}

</mosaic_0001>

<llo_original>
// kernel: tpu_custom_call.1
$region0: #{tpu_custom_call.1}
  #allocation0 [shape = 'u32[]', space=smem, size = 0x4, offset = 0x4, fixed_abs, tag = 'smem constant byte address 0x4 - core index']
  #allocation1 [shape = 'u32[72,128]{1,0:T(1,128)}', space=vmem, size = 0x9000, scoped, tag = 'internal scratch']
  #allocation2 [shape = 'f32[64,1]{1,0:T(8,128)}', space=vmem, size = 0x8000, scoped, tag = 'scratch operand']
  #allocation3 [shape = 'f32[64,1]{1,0:T(8,128)}', space=vmem, size = 0x8000, scoped, tag = 'scratch operand']
  #allocation4 [shape = 'f32[64,128]{1,0:T(8,128)}', space=vmem, size = 0x8000, scoped, tag = 'scratch operand']
  %s0 = inlined_call_operand.hbm [shape: bf16[2,256,128], index: 0, kind: input, shape index: {}]
  %s1 = inlined_call_operand.hbm [shape: bf16[2,256,128], index: 1, kind: input, shape index: {}]
  %s2 = inlined_call_operand.hbm [shape: bf16[2,256,128], index: 2, kind: input, shape index: {}]
  %s3 = inlined_call_operand.hbm [shape: f32[2,256,128], index: 3, kind: output, shape index: {}]
  %s4 = sld [smem:[#allocation0]]
  $region65: #{tpu_custom_call.1} parent=0
    _
  %s6 = ssub.s32 1, %s4
  %s7 = scalar_select 0, %s6, %s4
  $region1: #{tpu_custom_call.1} parent=0
    #allocation5 [shape = 'u8[32768]{0}', space=vmem, size = 0x8000, scoped, tag = 'input window, operand 0']
    #allocation6 [shape = 's32[2]{0}', space=sflag, size = 0x8, scoped, tag = 'scoped memory for tpu_custom_call.1']
    #allocation7 [shape = 's32[2]{0}', space=sflag, size = 0x8, scoped, tag = 'scoped memory for tpu_custom_call.1']
    #allocation8 [shape = 'u8[32768]{0}', space=vmem, size = 0x8000, scoped, tag = 'input window, operand 1']
    #allocation9 [shape = 's32[2]{0}', space=sflag, size = 0x8, scoped, tag = 'scoped memory for tpu_custom_call.1']
    #allocation10 [shape = 'u8[32768]{0}', space=vmem, size = 0x8000, scoped, tag = 'input window, operand 2']
    #allocation11 [shape = 'u8[65536]{0}', space=vmem, size = 0x10000, scoped, tag = 'output window, operand 0']
    %8 = vsyncpa [#allocation6], 0
    %s9 = scalar_lea.sflag [#allocation6], 1
    %10 = vsyncpa %s9, 0
    %11 = vsyncpa [#allocation9], 0
    %s12 = scalar_lea.sflag [#allocation9], 1
    %13 = vsyncpa %s12, 0
    %14 = vsyncpa [#allocation7], 0
    %s15 = scalar_lea.sflag [#allocation7], 1
    %16 = vsyncpa %s15, 0
    loop: start=0, step=1, limit=34
    $region2: #{tpu_custom_call.1} parent=1 // loop_pre_header
      _
    $region3: #{tpu_custom_call.1} parent=1 // loop_header
      %s18 = sphi 0, %s22
      %p19 = scmp.ge.s32.totalorder %s18, 34
      %s25 = sphi 0, %s44
      %s26 = sphi 0, %s40
      %s27 = sphi 0, %s36
      %s28 = sphi 0, %s25
      %s29 = sphi 0, %s26
      %s30 = sphi 0, %s27
      %s31 = sphi 0, %s28
      %s32 = sphi 0, %s29
      %s33 = sphi 0, %s30
      %s49 = sphi 0, %s51
      %s52 = sphi 0, %s49
      %s53 = sphi 0, %s52
      %s69 = sphi 0, %s53
      %s77 = sphi 0, %s79
      %s80 = sphi 0, %s77
      %s81 = sphi 0, %s80
      %s97 = sphi 0, %s81
      %s105 = sphi 0, %s107
      %s108 = sphi 0, %s105
      %s109 = sphi 0, %s108
      %s125 = sphi 0, %s109
      %s133 = sphi 0, %s135
      %s136 = sphi 0, %s133
      %s137 = sphi 0, %s136
      %s153 = sphi 0, %s137
    $region4: #{tpu_custom_call.1} parent=1 // loop_header_branch
      %21 = sbr.rel (%p19) target = $region8
    $region5: #{tpu_custom_call.1} parent=1 // loop_body
      %s23 = ssub.s32 %s18, 1
      %s24 = ssub.s32 %s18, 2
      %s34 = sadd.s32 1, %s27
      %p35 = scmp.ge.s32.totalorder %s34, 4
      %s36 = scalar_select %p35, 0, %s34
      %s37 = sadd.s32 1, %s26
      %s38 = scalar_select %p35, %s37, %s26
      %p39 = scmp.ge.s32.totalorder %s38, 4
      %s40 = scalar_select %p39, 0, %s38
      %s41 = sadd.s32 1, %s25
      %s42 = scalar_select %p39, %s41, %s25
      %p43 = scmp.ge.s32.totalorder %s42, 2
      %s44 = scalar_select %p43, 0, %s42
      %s45 = ssub.s32 %s25, %s44
      %s46 = ssub.s32 %s26, %s40
      %s47 = sor.u32 %s45, %s46
      %p48 = scmp.eq.s32.totalorder %s47, 0
      %s50 = sadd.s32 %s49, 1
      %s51 = scalar_select %p48, %s49, %s50
      %p54 = pneg %p48
      %p55 = scmp.eq.s32.totalorder %s18, 31
      %p56 = por %p54, %p55
      %p57 = scmp.ne.s32.totalorder %s49, %s52
      %p58 = scmp.eq.s32.totalorder %s18, 0
      %p59 = por %p57, %p58
      %p60 = scmp.ne.s32.totalorder %s49, %s52
      %p61 = scmp.eq.s32.totalorder %s23, 31
      %p62 = por %p60, %p61
      %p63 = scmp.ne.s32.totalorder %s52, %s53
      %p64 = scmp.eq.s32.totalorder %s23, 0
      %p65 = por %p63, %p64
      %p66 = scmp.ne.s32.totalorder %s52, %s53
      %p67 = scmp.eq.s32.totalorder %s24, 31
      %p68 = por %p66, %p67
      %p70 = scmp.ne.s32.totalorder %s53, %s69
      %p71 = scmp.eq.s32.totalorder %s24, 0
      %p72 = por %p70, %p71
      %s73 = ssub.s32 %s25, %s44
      %s74 = ssub.s32 %s27, %s36
      %s75 = sor.u32 %s73, %s74
      %p76 = scmp.eq.s32.totalorder %s75, 0
      %s78 = sadd.s32 %s77, 1
      %s79 = scalar_select %p76, %s77, %s78
      %p82 = pneg %p76
      %p83 = scmp.eq.s32.totalorder %s18, 31
      %p84 = por %p82, %p83
      %p85 = scmp.ne.s32.totalorder %s77, %s80
      %p86 = scmp.eq.s32.totalorder %s18, 0
      %p87 = por %p85, %p86
      %p88 = scmp.ne.s32.totalorder %s77, %s80
      %p89 = scmp.eq.s32.totalorder %s23, 31
      %p90 = por %p88, %p89
      %p91 = scmp.ne.s32.totalorder %s80, %s81
      %p92 = scmp.eq.s32.totalorder %s23, 0
      %p93 = por %p91, %p92
      %p94 = scmp.ne.s32.totalorder %s80, %s81
      %p95 = scmp.eq.s32.totalorder %s24, 31
      %p96 = por %p94, %p95
      %p98 = scmp.ne.s32.totalorder %s81, %s97
      %p99 = scmp.eq.s32.totalorder %s24, 0
      %p100 = por %p98, %p99
      %s101 = ssub.s32 %s25, %s44
      %s102 = ssub.s32 %s27, %s36
      %s103 = sor.u32 %s101, %s102
      %p104 = scmp.eq.s32.totalorder %s103, 0
      %s106 = sadd.s32 %s105, 1
      %s107 = scalar_select %p104, %s105, %s106
      %p110 = pneg %p104
      %p111 = scmp.eq.s32.totalorder %s18, 31
      %p112 = por %p110, %p111
      %p113 = scmp.ne.s32.totalorder %s105, %s108
      %p114 = scmp.eq.s32.totalorder %s18, 0
      %p115 = por %p113, %p114
      %p116 = scmp.ne.s32.totalorder %s105, %s108
      %p117 = scmp.eq.s32.totalorder %s23, 31
      %p118 = por %p116, %p117
      %p119 = scmp.ne.s32.totalorder %s108, %s109
      %p120 = scmp.eq.s32.totalorder %s23, 0
      %p121 = por %p119, %p120
      %p122 = scmp.ne.s32.totalorder %s108, %s109
      %p123 = scmp.eq.s32.totalorder %s24, 31
      %p124 = por %p122, %p123
      %p126 = scmp.ne.s32.totalorder %s109, %s125
      %p127 = scmp.eq.s32.totalorder %s24, 0
      %p128 = por %p126, %p127
      %s129 = ssub.s32 %s25, %s44
      %s130 = ssub.s32 %s26, %s40
      %s131 = sor.u32 %s129, %s130
      %p132 = scmp.eq.s32.totalorder %s131, 0
      %s134 = sadd.s32 %s133, 1
      %s135 = scalar_select %p132, %s133, %s134
      %p138 = pneg %p132
      %p139 = scmp.eq.s32.totalorder %s18, 31
      %p140 = por %p138, %p139
      %p141 = scmp.ne.s32.totalorder %s133, %s136
      %p142 = scmp.eq.s32.totalorder %s18, 0
      %p143 = por %p141, %p142
      %p144 = scmp.ne.s32.totalorder %s133, %s136
      %p145 = scmp.eq.s32.totalorder %s23, 31
      %p146 = por %p144, %p145
      %p147 = scmp.ne.s32.totalorder %s136, %s137
      %p148 = scmp.eq.s32.totalorder %s23, 0
      %p149 = por %p147, %p148
      %p150 = scmp.ne.s32.totalorder %s136, %s137
      %p151 = scmp.eq.s32.totalorder %s24, 31
      %p152 = por %p150, %p151
      %p154 = scmp.ne.s32.totalorder %s137, %s153
      %p155 = scmp.eq.s32.totalorder %s24, 0
      %p156 = por %p154, %p155
      %p157 = scmp.le.s32.totalorder 1, %s18
      %p158 = scmp.lt.s32.totalorder %s18, 33
      %p159 = pnand %p157, %p158
      %p160 = pneg %p159
      // Predicated region
      $region9: #{tpu_custom_call.1} parent=5 // pred_check
        _
      $region10: #{tpu_custom_call.1} parent=5 // pred_check_branch
        %162 = sbr.rel (%p159) target = $region12
      $region11: #{tpu_custom_call.1} parent=5 // pred_region
        %s163 = ssub.s32 %s18, 1
      $region12: #{tpu_custom_call.1} parent=5 // pred_fallthru
        _
      %p164 = scmp.lt.s32.totalorder %s18, 32
      // Predicated region
      $region13: #{tpu_custom_call.1} parent=5 // pred_check
        %p165 = pneg %p164
      $region14: #{tpu_custom_call.1} parent=5 // pred_check_branch
        %167 = sbr.rel (%p165) target = $region16
      $region15: #{tpu_custom_call.1} parent=5 // pred_region
        // Predicated region
        $region17: #{tpu_custom_call.1} parent=15 // pred_check
          %p168 = pneg %p59
        $region18: #{tpu_custom_call.1} parent=15 // pred_check_branch
          %170 = sbr.rel (%p168) target = $region20
        $region19: #{tpu_custom_call.1} parent=15 // pred_region
          %s171 = sand.u32 %s49, 1
          %s172 = scalar_lea.sflag [#allocation6], %s171
          %s173 = sand.u32 %s49, 1
          %s174 = smul.addr %s173, 32
          %s175 = scalar_lea.vmem [#allocation5], %s174
          %s176 = smul.u32 8, %s26
          %178 = vsyncadd %s172, 0
          %s179 = smul.addr %s25, 32
          %s180 = sadd.s32 %s176, %s179
          %s181 = smul.addr %s180, 4
          %s182 = scalar_lea.hbm %s0, %s181
          %s183 = sshll.u32 %s182, 4
          %s184 = int_to_ptr.hbm [resolvable:$true] %s183
          %s185 = sshll.u32 %s175, 4
          %s186 = int_to_ptr.vmem [resolvable:$true] %s185
          %191 = dma.hbm_to_vmem [thread:$0]  %s184, 512, %s186, %s172, 64, 64, 4
        $region20: #{tpu_custom_call.1} parent=15 // pred_fallthru
          _
        // Predicated region
        $region21: #{tpu_custom_call.1} parent=15 // pred_check
          %p192 = pneg %p87
        $region22: #{tpu_custom_call.1} parent=15 // pred_check_branch
          %194 = sbr.rel (%p192) target = $region24
        $region23: #{tpu_custom_call.1} parent=15 // pred_region
          %s195 = sand.u32 %s18, 1
          %s196 = scalar_lea.sflag [#allocation9], %s195
          %s197 = sand.u32 %s77, 1
          %s198 = smul.addr %s197, 32
          %s199 = scalar_lea.vmem [#allocation8], %s198
          %s200 = smul.u32 8, %s27
          %202 = vsyncadd %s196, 0
          %s203 = smul.addr %s25, 32
          %s204 = sadd.s32 %s200, %s203
          %s205 = smul.addr %s204, 4
          %s206 = scalar_lea.hbm %s1, %s205
          %s207 = sshll.u32 %s206, 4
          %s208 = int_to_ptr.hbm [resolvable:$true] %s207
          %s209 = sshll.u32 %s199, 4
          %s210 = int_to_ptr.vmem [resolvable:$true] %s209
          %215 = dma.hbm_to_vmem [thread:$0]  %s208, 512, %s210, %s196, 64, 64, 4
        $region24: #{tpu_custom_call.1} parent=15 // pred_fallthru
          _
        // Predicated region
        $region25: #{tpu_custom_call.1} parent=15 // pred_check
          %p216 = pneg %p115
        $region26: #{tpu_custom_call.1} parent=15 // pred_check_branch
          %218 = sbr.rel (%p216) target = $region28
        $region27: #{tpu_custom_call.1} parent=15 // pred_region
          %s219 = sand.u32 %s18, 1
          %s220 = scalar_lea.sflag [#allocation9], %s219
          %s221 = sand.u32 %s105, 1
          %s222 = smul.addr %s221, 32
          %s223 = scalar_lea.vmem [#allocation10], %s222
          %s224 = smul.u32 8, %s27
          %226 = vsyncadd %s220, 0
          %s227 = smul.addr %s25, 32
          %s228 = sadd.s32 %s224, %s227
          %s229 = smul.addr %s228, 4
          %s230 = scalar_lea.hbm %s2, %s229
          %s231 = sshll.u32 %s230, 4
          %s232 = int_to_ptr.hbm [resolvable:$true] %s231
          %s233 = sshll.u32 %s223, 4
          %s234 = int_to_ptr.vmem [resolvable:$true] %s233
          %239 = dma.hbm_to_vmem [thread:$0]  %s232, 512, %s234, %s220, 64, 64, 4
        $region28: #{tpu_custom_call.1} parent=15 // pred_fallthru
          _
      $region16: #{tpu_custom_call.1} parent=5 // pred_fallthru
        _
      %p240 = scmp.le.s32.totalorder 1, %s18
      %p241 = scmp.lt.s32.totalorder %s18, 33
      %p242 = pnand %p240, %p241
      %p243 = pneg %p242
      // Predicated region
      $region29: #{tpu_custom_call.1} parent=5 // pred_check
        _
      $region30: #{tpu_custom_call.1} parent=5 // pred_check_branch
        %245 = sbr.rel (%p242) target = $region32
      $region31: #{tpu_custom_call.1} parent=5 // pred_region
        %s246 = ssub.s32 %s18, 1
        %s247 = sand.u32 %s52, 1
        %s248 = scalar_lea.sflag [#allocation6], %s247
        %s249 = sand.u32 %s52, 1
        %s250 = smul.addr %s249, 32
        %s251 = scalar_lea.vmem [#allocation5], %s250
        // Predicated region
        $region33: #{tpu_custom_call.1} parent=31 // pred_check
          %p252 = pneg %p65
        $region34: #{tpu_custom_call.1} parent=31 // pred_check_branch
          %254 = sbr.rel (%p252) target = $region36
        $region35: #{tpu_custom_call.1} parent=31 // pred_region
          %256 = dma.done %s248, 512
        $region36: #{tpu_custom_call.1} parent=31 // pred_fallthru
          _
        %s257 = sand.u32 %s23, 1
        %s258 = scalar_lea.sflag [#allocation9], %s257
        %s259 = sand.u32 %s80, 1
        %s260 = smul.addr %s259, 32
        %s261 = scalar_lea.vmem [#allocation8], %s260
        // Predicated region
        $region37: #{tpu_custom_call.1} parent=31 // pred_check
          %p262 = pneg %p93
        $region38: #{tpu_custom_call.1} parent=31 // pred_check_branch
          %264 = sbr.rel (%p262) target = $region40
        $region39: #{tpu_custom_call.1} parent=31 // pred_region
          %266 = dma.done %s258, 512
        $region40: #{tpu_custom_call.1} parent=31 // pred_fallthru
          _
        %s267 = sand.u32 %s23, 1
        %s268 = scalar_lea.sflag [#allocation9], %s267
        %s269 = sand.u32 %s108, 1
        %s270 = smul.addr %s269, 32
        %s271 = scalar_lea.vmem [#allocation10], %s270
        // Predicated region
        $region41: #{tpu_custom_call.1} parent=31 // pred_check
          %p272 = pneg %p121
        $region42: #{tpu_custom_call.1} parent=31 // pred_check_branch
          %274 = sbr.rel (%p272) target = $region44
        $region43: #{tpu_custom_call.1} parent=31 // pred_region
          %276 = dma.done %s268, 512
        $region44: #{tpu_custom_call.1} parent=31 // pred_fallthru
          _
        %s277 = sand.u32 %s52, 1
        %s278 = scalar_lea.sflag [#allocation6], %s277
        %s279 = sand.u32 %s52, 1
        %s280 = smul.addr %s279, 32
        %s281 = scalar_lea.vmem [#allocation5], %s280
        %p282 = pneg %p65
        %p283 = pneg %p62
        %s284 = sand.u32 %s23, 1
        %s285 = scalar_lea.sflag [#allocation9], %s284
        %s286 = sand.u32 %s80, 1
        %s287 = smul.addr %s286, 32
        %s288 = scalar_lea.vmem [#allocation8], %s287
        %p289 = pneg %p93
        %p290 = pneg %p90
        %s291 = sand.u32 %s23, 1
        %s292 = scalar_lea.sflag [#allocation9], %s291
        %s293 = sand.u32 %s108, 1
        %s294 = smul.addr %s293, 32
        %s295 = scalar_lea.vmem [#allocation10], %s294
        %p296 = pneg %p121
        %p297 = pneg %p118
        %p298 = pneg %p149
        %p299 = pneg %p146
        %s300 = sand.u32 %s136, 1
        %s301 = scalar_lea.sflag [#allocation7], %s300
        %s302 = sand.u32 %s136, 1
        %s303 = smul.addr %s302, 64
        %s304 = scalar_lea.vmem [#allocation11], %s303
        %s305 = smul.u32 8, %s29
        %s306 = smul.u32 8, %s30
        %s307 = smul.u32 8, %s30
        %s308 = smul.u32 8, %s29
        %p310 = scmp.eq.s32.totalorder %s30, 0
        // Predicated region
        $region45: #{tpu_custom_call.1} parent=31 // pred_check
          %p311 = pneg %p310
        $region46: #{tpu_custom_call.1} parent=31 // pred_check_branch
          %313 = sbr.rel (%p311) target = $region48
        $region47: #{tpu_custom_call.1} parent=31 // pred_region
          %vm314 = vcmask 7168
          %315 = vst.msk [vmem:[#allocation2] sm:$0xff] %vm314, -inf
          %316 = vst.msk [vmem:[#allocation2 + $0x8] sm:$0xff] %vm314, -inf
          %317 = vst.msk [vmem:[#allocation2 + $0x10] sm:$0xff] %vm314, -inf
          %318 = vst.msk [vmem:[#allocation2 + $0x18] sm:$0xff] %vm314, -inf
          %319 = vst.msk [vmem:[#allocation2 + $0x20] sm:$0xff] %vm314, -inf
          %320 = vst.msk [vmem:[#allocation2 + $0x28] sm:$0xff] %vm314, -inf
          %321 = vst.msk [vmem:[#allocation2 + $0x30] sm:$0xff] %vm314, -inf
          %322 = vst.msk [vmem:[#allocation2 + $0x38] sm:$0xff] %vm314, -inf
          %323 = vst.msk [vmem:[#allocation3] sm:$0xff] %vm314, 0.0
          %324 = vst.msk [vmem:[#allocation3 + $0x8] sm:$0xff] %vm314, 0.0
          %325 = vst.msk [vmem:[#allocation3 + $0x10] sm:$0xff] %vm314, 0.0
          %326 = vst.msk [vmem:[#allocation3 + $0x18] sm:$0xff] %vm314, 0.0
          %327 = vst.msk [vmem:[#allocation3 + $0x20] sm:$0xff] %vm314, 0.0
          %328 = vst.msk [vmem:[#allocation3 + $0x28] sm:$0xff] %vm314, 0.0
          %329 = vst.msk [vmem:[#allocation3 + $0x30] sm:$0xff] %vm314, 0.0
          %330 = vst.msk [vmem:[#allocation3 + $0x38] sm:$0xff] %vm314, 0.0
          %331 = vst [vmem:[#allocation4] sm:$0xff] 0.0
          %332 = vst [vmem:[#allocation4 + $0x8] sm:$0xff] 0.0
          %333 = vst [vmem:[#allocation4 + $0x10] sm:$0xff] 0.0
          %334 = vst [vmem:[#allocation4 + $0x18] sm:$0xff] 0.0
          %335 = vst [vmem:[#allocation4 + $0x20] sm:$0xff] 0.0
          %336 = vst [vmem:[#allocation4 + $0x28] sm:$0xff] 0.0
          %337 = vst [vmem:[#allocation4 + $0x30] sm:$0xff] 0.0
          %338 = vst [vmem:[#allocation4 + $0x38] sm:$0xff] 0.0
        $region48: #{tpu_custom_call.1} parent=31 // pred_fallthru
          _
        %v339 = vld [vmem:[%s251] sm:$0xf]
        %v340 = vld [vmem:[%s251 + $0x4] sm:$0xf]
        %v341 = vld [vmem:[%s251 + $0x8] sm:$0xf]
        %v342 = vld [vmem:[%s251 + $0xc] sm:$0xf]
        %v343 = vld [vmem:[%s251 + $0x10] sm:$0xf]
        %v344 = vld [vmem:[%s251 + $0x14] sm:$0xf]
        %v345 = vld [vmem:[%s251 + $0x18] sm:$0xf]
        %v346 = vld [vmem:[%s251 + $0x1c] sm:$0xf]
        %v347 = vld [vmem:[%s261] sm:$0xf]
        %v348 = vld [vmem:[%s261 + $0x4] sm:$0xf]
        %v349 = vld [vmem:[%s261 + $0x8] sm:$0xf]
        %v350 = vld [vmem:[%s261 + $0xc] sm:$0xf]
        %v351 = vld [vmem:[%s261 + $0x10] sm:$0xf]
        %v352 = vld [vmem:[%s261 + $0x14] sm:$0xf]
        %v353 = vld [vmem:[%s261 + $0x18] sm:$0xf]
        %v354 = vld [vmem:[%s261 + $0x1c] sm:$0xf]
        %v363 = vunpack.c.l.b16 %v339
        %v364 = vunpack.c.l.b16 %v340
        %v365 = vunpack.c.l.b16 %v341
        %v366 = vunpack.c.l.b16 %v342
        %v367 = vunpack.c.l.b16 %v343
        %v368 = vunpack.c.l.b16 %v344
        %v369 = vunpack.c.l.b16 %v345
        %v370 = vunpack.c.l.b16 %v346
        %v371 = vpack.c.b16 %v364, %v363
        %v372 = vpack.c.b16 %v366, %v365
        %v373 = vpack.c.b16 %v368, %v367
        %v374 = vpack.c.b16 %v370, %v369
        %v387 = vunpack.c.l.b16 %v347
        %v388 = vunpack.c.l.b16 %v348
        %v389 = vunpack.c.l.b16 %v349
        %v390 = vunpack.c.l.b16 %v350
        %v391 = vunpack.c.l.b16 %v351
        %v392 = vunpack.c.l.b16 %v352
        %v393 = vunpack.c.l.b16 %v353
        %v394 = vunpack.c.l.b16 %v354
        %v395 = vpack.c.b16 %v388, %v387
        %v396 = vpack.c.b16 %v390, %v389
        %v397 = vpack.c.b16 %v392, %v391
        %v398 = vpack.c.b16 %v394, %v393
        %403 = vmatpush.bf16.xpose.msra.mxu0 0
        %404 = vmatpush.bf16.xpose.msra.mxu0 0
        %405 = vmatpush.bf16.xpose.msra.mxu0 0
        %406 = vmatpush.bf16.xpose.msra.mxu0 0
        %407 = vmatpush.bf16.xpose.msra.mxu0 %v398
        %408 = vmatpush.bf16.xpose.msra.mxu0 %v397
        %409 = vmatpush.bf16.xpose.msra.mxu0 %v396
        %410 = vmatpush.bf16.xpose.msra.mxu0 %v395
        %411 = vmatmul.bf16.gmra.mxu0 %v371
        %v412 = vpop.f32.mrf.mxu0
        %v413 = vadd.f32 0.0, %v412
        %v414 = vpop.f32.mrf.mxu0
        %v415 = vadd.f32 0.0, %v414
        %416 = vmatmul.bf16.gmra.mxu0 %v372
        %v417 = vpop.f32.mrf.mxu0
        %v418 = vadd.f32 0.0, %v417
        %v419 = vpop.f32.mrf.mxu0
        %v420 = vadd.f32 0.0, %v419
        %421 = vmatmul.bf16.gmra.mxu0 %v373
        %v422 = vpop.f32.mrf.mxu0
        %v423 = vadd.f32 0.0, %v422
        %v424 = vpop.f32.mrf.mxu0
        %v425 = vadd.f32 0.0, %v424
        %426 = vmatmul.bf16.gmra.mxu0 %v374
        %v427 = vpop.f32.mrf.mxu0
        %v428 = vadd.f32 0.0, %v427
        %v429 = vpop.f32.mrf.mxu0
        %v430 = vadd.f32 0.0, %v429
        %431 = vdwg.mxu0
        %v432 = vld [vmem:[#allocation2] sm:$0xff]
        %v433 = vld [vmem:[#allocation2 + $0x8] sm:$0xff]
        %v434 = vld [vmem:[#allocation2 + $0x10] sm:$0xff]
        %v435 = vld [vmem:[#allocation2 + $0x18] sm:$0xff]
        %v436 = vld [vmem:[#allocation2 + $0x20] sm:$0xff]
        %v437 = vld [vmem:[#allocation2 + $0x28] sm:$0xff]
        %v438 = vld [vmem:[#allocation2 + $0x30] sm:$0xff]
        %v439 = vld [vmem:[#allocation2 + $0x38] sm:$0xff]
        %vm440 = vcmask 523264
        %v441 = vsel %vm440, %v413, -inf
        %442 = vmax.xlane.f32.xlu0 %v441
        %v443 = vpop.xlane.xlu0 %442
        %v444 = vsel %vm440, %v415, -inf
        %445 = vmax.xlane.f32.xlu0 %v444
        %v446 = vpop.xlane.xlu0 %445
        %v447 = vsel %vm440, %v418, -inf
        %448 = vmax.xlane.f32.xlu0 %v447
        %v449 = vpop.xlane.xlu0 %448
        %v450 = vsel %vm440, %v420, -inf
        %451 = vmax.xlane.f32.xlu0 %v450
        %v452 = vpop.xlane.xlu0 %451
        %v453 = vsel %vm440, %v423, -inf
        %454 = vmax.xlane.f32.xlu0 %v453
        %v455 = vpop.xlane.xlu0 %454
        %v456 = vsel %vm440, %v425, -inf
        %457 = vmax.xlane.f32.xlu0 %v456
        %v458 = vpop.xlane.xlu0 %457
        %v459 = vsel %vm440, %v428, -inf
        %460 = vmax.xlane.f32.xlu0 %v459
        %v461 = vpop.xlane.xlu0 %460
        %v462 = vsel %vm440, %v430, -inf
        %463 = vmax.xlane.f32.xlu0 %v462
        %v464 = vpop.xlane.xlu0 %463
        %v465 = vmax.f32 %v432, %v443
        %v466 = vmax.f32 %v433, %v446
        %v467 = vmax.f32 %v434, %v449
        %v468 = vmax.f32 %v435, %v452
        %v469 = vmax.f32 %v436, %v455
        %v470 = vmax.f32 %v437, %v458
        %v471 = vmax.f32 %v438, %v461
        %v472 = vmax.f32 %v439, %v464
        %v473 = vsub.f32 %v432, %v465
        %v474 = vsub.f32 %v433, %v466
        %v475 = vsub.f32 %v434, %v467
        %v476 = vsub.f32 %v435, %v468
        %v477 = vsub.f32 %v436, %v469
        %v478 = vsub.f32 %v437, %v470
        %v479 = vsub.f32 %v438, %v471
        %v480 = vsub.f32 %v439, %v472
        %v481 = vmul.f32 %v473, 1.442695
        %v482 = vpow.pop %v481
        %v483 = vmul.f32 %v474, 1.442695
        %v484 = vpow.pop %v483
        %v485 = vmul.f32 %v475, 1.442695
        %v486 = vpow.pop %v485
        %v487 = vmul.f32 %v476, 1.442695
        %v488 = vpow.pop %v487
        %v489 = vmul.f32 %v477, 1.442695
        %v490 = vpow.pop %v489
        %v491 = vmul.f32 %v478, 1.442695
        %v492 = vpow.pop %v491
        %v493 = vmul.f32 %v479, 1.442695
        %v494 = vpow.pop %v493
        %v495 = vmul.f32 %v480, 1.442695
        %v496 = vpow.pop %v495
        %498 = vset.pattern.permute.xlu0 0
        %499 = vperm.xlu0 %498, %v465
        %v500 = vpop.permute.xlu0 %499
        %503 = vset.pattern.permute.xlu0 0
        %504 = vperm.xlu0 %503, %v466
        %v505 = vpop.permute.xlu0 %504
        %508 = vset.pattern.permute.xlu0 0
        %509 = vperm.xlu0 %508, %v467
        %v510 = vpop.permute.xlu0 %509
        %513 = vset.pattern.permute.xlu0 0
        %514 = vperm.xlu0 %513, %v468
        %v515 = vpop.permute.xlu0 %514
        %518 = vset.pattern.permute.xlu0 0
        %519 = vperm.xlu0 %518, %v469
        %v520 = vpop.permute.xlu0 %519
        %523 = vset.pattern.permute.xlu0 0
        %524 = vperm.xlu0 %523, %v470
        %v525 = vpop.permute.xlu0 %524
        %528 = vset.pattern.permute.xlu0 0
        %529 = vperm.xlu0 %528, %v471
        %v530 = vpop.permute.xlu0 %529
        %533 = vset.pattern.permute.xlu0 0
        %534 = vperm.xlu0 %533, %v472
        %v535 = vpop.permute.xlu0 %534
        %v537 = vsub.f32 %v413, %v500
        %v538 = vsub.f32 %v415, %v505
        %v539 = vsub.f32 %v418, %v510
        %v540 = vsub.f32 %v420, %v515
        %v541 = vsub.f32 %v423, %v520
        %v542 = vsub.f32 %v425, %v525
        %v543 = vsub.f32 %v428, %v530
        %v544 = vsub.f32 %v430, %v535
        %v545 = vpack.c.bf16 %v538, %v537
        %v546 = vpack.c.bf16 %v540, %v539
        %v547 = vpack.c.bf16 %v542, %v541
        %v548 = vpack.c.bf16 %v544, %v543
        %v549 = vunpack.c.l.bf16 %v545
        %v550 = vunpack.c.h.bf16 %v545
        %v551 = vunpack.c.l.bf16 %v546
        %v552 = vunpack.c.h.bf16 %v546
        %v553 = vunpack.c.l.bf16 %v547
        %v554 = vunpack.c.h.bf16 %v547
        %v555 = vunpack.c.l.bf16 %v548
        %v556 = vunpack.c.h.bf16 %v548
        %v557 = vmul.f32 %v549, 1.442695
        %v558 = vpow.pop %v557
        %v559 = vmul.f32 %v550, 1.442695
        %v560 = vpow.pop %v559
        %v561 = vmul.f32 %v551, 1.442695
        %v562 = vpow.pop %v561
        %v563 = vmul.f32 %v552, 1.442695
        %v564 = vpow.pop %v563
        %v565 = vmul.f32 %v553, 1.442695
        %v566 = vpow.pop %v565
        %v567 = vmul.f32 %v554, 1.442695
        %v568 = vpow.pop %v567
        %v569 = vmul.f32 %v555, 1.442695
        %v570 = vpow.pop %v569
        %v571 = vmul.f32 %v556, 1.442695
        %v572 = vpow.pop %v571
        %v573 = vpack.c.bf16 %v560, %v558
        %v574 = vpack.c.bf16 %v564, %v562
        %v575 = vpack.c.bf16 %v568, %v566
        %v576 = vpack.c.bf16 %v572, %v570
        %v577 = vld [vmem:[#allocation3] sm:$0xff]
        %v578 = vld [vmem:[#allocation3 + $0x8] sm:$0xff]
        %v579 = vld [vmem:[#allocation3 + $0x10] sm:$0xff]
        %v580 = vld [vmem:[#allocation3 + $0x18] sm:$0xff]
        %v581 = vld [vmem:[#allocation3 + $0x20] sm:$0xff]
        %v582 = vld [vmem:[#allocation3 + $0x28] sm:$0xff]
        %v583 = vld [vmem:[#allocation3 + $0x30] sm:$0xff]
        %v584 = vld [vmem:[#allocation3 + $0x38] sm:$0xff]
        %v585 = vmul.f32 %v482, %v577
        %v586 = vmul.f32 %v484, %v578
        %v587 = vmul.f32 %v486, %v579
        %v588 = vmul.f32 %v488, %v580
        %v589 = vmul.f32 %v490, %v581
        %v590 = vmul.f32 %v492, %v582
        %v591 = vmul.f32 %v494, %v583
        %v592 = vmul.f32 %v496, %v584
        %v593 = vunpack.c.l.bf16 %v573
        %v594 = vunpack.c.h.bf16 %v573
        %v595 = vunpack.c.l.bf16 %v574
        %v596 = vunpack.c.h.bf16 %v574
        %v597 = vunpack.c.l.bf16 %v575
        %v598 = vunpack.c.h.bf16 %v575
        %v599 = vunpack.c.l.bf16 %v576
        %v600 = vunpack.c.h.bf16 %v576
        %v601 = vsel %vm440, %v593, 0.0
        %602 = vadd.xlane.f32.xlu0 %v601
        %v603 = vpop.xlane.xlu0 %602
        %v604 = vsel %vm440, %v594, 0.0
        %605 = vadd.xlane.f32.xlu0 %v604
        %v606 = vpop.xlane.xlu0 %605
        %v607 = vsel %vm440, %v595, 0.0
        %608 = vadd.xlane.f32.xlu0 %v607
        %v609 = vpop.xlane.xlu0 %608
        %v610 = vsel %vm440, %v596, 0.0
        %611 = vadd.xlane.f32.xlu0 %v610
        %v612 = vpop.xlane.xlu0 %611
        %v613 = vsel %vm440, %v597, 0.0
        %614 = vadd.xlane.f32.xlu0 %v613
        %v615 = vpop.xlane.xlu0 %614
        %v616 = vsel %vm440, %v598, 0.0
        %617 = vadd.xlane.f32.xlu0 %v616
        %v618 = vpop.xlane.xlu0 %617
        %v619 = vsel %vm440, %v599, 0.0
        %620 = vadd.xlane.f32.xlu0 %v619
        %v621 = vpop.xlane.xlu0 %620
        %v622 = vsel %vm440, %v600, 0.0
        %623 = vadd.xlane.f32.xlu0 %v622
        %v624 = vpop.xlane.xlu0 %623
        %v625 = vadd.f32 %v585, %v603
        %v626 = vadd.f32 %v586, %v606
        %v627 = vadd.f32 %v587, %v609
        %v628 = vadd.f32 %v588, %v612
        %v629 = vadd.f32 %v589, %v615
        %v630 = vadd.f32 %v590, %v618
        %v631 = vadd.f32 %v591, %v621
        %v632 = vadd.f32 %v592, %v624
        %vm633 = vcmask 7168
        %634 = vst.msk [vmem:[#allocation3] sm:$0xff] %vm633, %v625
        %635 = vst.msk [vmem:[#allocation3 + $0x8] sm:$0xff] %vm633, %v626
        %636 = vst.msk [vmem:[#allocation3 + $0x10] sm:$0xff] %vm633, %v627
        %637 = vst.msk [vmem:[#allocation3 + $0x18] sm:$0xff] %vm633, %v628
        %638 = vst.msk [vmem:[#allocation3 + $0x20] sm:$0xff] %vm633, %v629
        %639 = vst.msk [vmem:[#allocation3 + $0x28] sm:$0xff] %vm633, %v630
        %640 = vst.msk [vmem:[#allocation3 + $0x30] sm:$0xff] %vm633, %v631
        %641 = vst.msk [vmem:[#allocation3 + $0x38] sm:$0xff] %vm633, %v632
        %v642 = vld [vmem:[#allocation4] sm:$0xff]
        %v643 = vld [vmem:[#allocation4 + $0x8] sm:$0xff]
        %v644 = vld [vmem:[#allocation4 + $0x10] sm:$0xff]
        %v645 = vld [vmem:[#allocation4 + $0x18] sm:$0xff]
        %v646 = vld [vmem:[#allocation4 + $0x20] sm:$0xff]
        %v647 = vld [vmem:[#allocation4 + $0x28] sm:$0xff]
        %v648 = vld [vmem:[#allocation4 + $0x30] sm:$0xff]
        %v649 = vld [vmem:[#allocation4 + $0x38] sm:$0xff]
        %651 = vset.pattern.permute.xlu0 0
        %652 = vperm.xlu0 %651, %v482
        %v653 = vpop.permute.xlu0 %652
        %656 = vset.pattern.permute.xlu0 0
        %657 = vperm.xlu0 %656, %v484
        %v658 = vpop.permute.xlu0 %657
        %661 = vset.pattern.permute.xlu0 0
        %662 = vperm.xlu0 %661, %v486
        %v663 = vpop.permute.xlu0 %662
        %666 = vset.pattern.permute.xlu0 0
        %667 = vperm.xlu0 %666, %v488
        %v668 = vpop.permute.xlu0 %667
        %671 = vset.pattern.permute.xlu0 0
        %672 = vperm.xlu0 %671, %v490
        %v673 = vpop.permute.xlu0 %672
        %676 = vset.pattern.permute.xlu0 0
        %677 = vperm.xlu0 %676, %v492
        %v678 = vpop.permute.xlu0 %677
        %681 = vset.pattern.permute.xlu0 0
        %682 = vperm.xlu0 %681, %v494
        %v683 = vpop.permute.xlu0 %682
        %686 = vset.pattern.permute.xlu0 0
        %687 = vperm.xlu0 %686, %v496
        %v688 = vpop.permute.xlu0 %687
        %v690 = vmul.f32 %v653, %v642
        %v691 = vmul.f32 %v658, %v643
        %v692 = vmul.f32 %v663, %v644
        %v693 = vmul.f32 %v668, %v645
        %v694 = vmul.f32 %v673, %v646
        %v695 = vmul.f32 %v678, %v647
        %v696 = vmul.f32 %v683, %v648
        %v697 = vmul.f32 %v688, %v649
        %v698 = vld [vmem:[%s271] sm:$0xf]
        %v699 = vld [vmem:[%s271 + $0x4] sm:$0xf]
        %v700 = vld [vmem:[%s271 + $0x8] sm:$0xf]
        %v701 = vld [vmem:[%s271 + $0xc] sm:$0xf]
        %v702 = vld [vmem:[%s271 + $0x10] sm:$0xf]
        %v703 = vld [vmem:[%s271 + $0x14] sm:$0xf]
        %v704 = vld [vmem:[%s271 + $0x18] sm:$0xf]
        %v705 = vld [vmem:[%s271 + $0x1c] sm:$0xf]
        %v714 = vunpack.c.l.b16 %v698
        %v715 = vunpack.c.l.b16 %v699
        %v716 = vunpack.c.l.b16 %v700
        %v717 = vunpack.c.l.b16 %v701
        %v718 = vunpack.c.l.b16 %v702
        %v719 = vunpack.c.l.b16 %v703
        %v720 = vunpack.c.l.b16 %v704
        %v721 = vunpack.c.l.b16 %v705
        %v722 = vpack.c.b16 %v715, %v714
        %v723 = vpack.c.b16 %v717, %v716
        %v724 = vpack.c.b16 %v719, %v718
        %v725 = vpack.c.b16 %v721, %v720
        %v731 = vsel %vm440, %v573, 0
        %v734 = vsel %vm440, %v574, 0
        %v737 = vsel %vm440, %v575, 0
        %v740 = vsel %vm440, %v576, 0
        %742 = vmatpush.bf16.msra.mxu0 0
        %743 = vmatpush.bf16.msra.mxu0 0
        %744 = vmatpush.bf16.msra.mxu0 0
        %745 = vmatpush.bf16.msra.mxu0 0
        %746 = vmatpush.bf16.msra.mxu0 %v725
        %747 = vmatpush.bf16.msra.mxu0 %v724
        %748 = vmatpush.bf16.msra.mxu0 %v723
        %749 = vmatpush.bf16.msra.mxu0 %v722
        %750 = vmatmul.bf16.gmra.mxu0 %v731
        %v751 = vpop.f32.mrf.mxu0
        %v752 = vadd.f32 0.0, %v751
        %v753 = vpop.f32.mrf.mxu0
        %v754 = vadd.f32 0.0, %v753
        %755 = vmatmul.bf16.gmra.mxu0 %v734
        %v756 = vpop.f32.mrf.mxu0
        %v757 = vadd.f32 0.0, %v756
        %v758 = vpop.f32.mrf.mxu0
        %v759 = vadd.f32 0.0, %v758
        %760 = vmatmul.bf16.gmra.mxu0 %v737
        %v761 = vpop.f32.mrf.mxu0
        %v762 = vadd.f32 0.0, %v761
        %v763 = vpop.f32.mrf.mxu0
        %v764 = vadd.f32 0.0, %v763
        %765 = vmatmul.bf16.gmra.mxu0 %v740
        %v766 = vpop.f32.mrf.mxu0
        %v767 = vadd.f32 0.0, %v766
        %v768 = vpop.f32.mrf.mxu0
        %v769 = vadd.f32 0.0, %v768
        %770 = vdwg.mxu0
        %v771 = vadd.f32 %v690, %v752
        %v772 = vadd.f32 %v691, %v754
        %v773 = vadd.f32 %v692, %v757
        %v774 = vadd.f32 %v693, %v759
        %v775 = vadd.f32 %v694, %v762
        %v776 = vadd.f32 %v695, %v764
        %v777 = vadd.f32 %v696, %v767
        %v778 = vadd.f32 %v697, %v769
        %779 = vst [vmem:[#allocation4] sm:$0xff] %v771
        %780 = vst [vmem:[#allocation4 + $0x8] sm:$0xff] %v772
        %781 = vst [vmem:[#allocation4 + $0x10] sm:$0xff] %v773
        %782 = vst [vmem:[#allocation4 + $0x18] sm:$0xff] %v774
        %783 = vst [vmem:[#allocation4 + $0x20] sm:$0xff] %v775
        %784 = vst [vmem:[#allocation4 + $0x28] sm:$0xff] %v776
        %785 = vst [vmem:[#allocation4 + $0x30] sm:$0xff] %v777
        %786 = vst [vmem:[#allocation4 + $0x38] sm:$0xff] %v778
        %787 = vst.msk [vmem:[#allocation2] sm:$0xff] %vm633, %v465
        %788 = vst.msk [vmem:[#allocation2 + $0x8] sm:$0xff] %vm633, %v466
        %789 = vst.msk [vmem:[#allocation2 + $0x10] sm:$0xff] %vm633, %v467
        %790 = vst.msk [vmem:[#allocation2 + $0x18] sm:$0xff] %vm633, %v468
        %791 = vst.msk [vmem:[#allocation2 + $0x20] sm:$0xff] %vm633, %v469
        %792 = vst.msk [vmem:[#allocation2 + $0x28] sm:$0xff] %vm633, %v470
        %793 = vst.msk [vmem:[#allocation2 + $0x30] sm:$0xff] %vm633, %v471
        %794 = vst.msk [vmem:[#allocation2 + $0x38] sm:$0xff] %vm633, %v472
        %p795 = scmp.eq.s32.totalorder %s30, 3
        // Predicated region
        $region49: #{tpu_custom_call.1} parent=31 // pred_check
          %p796 = pneg %p795
        $region50: #{tpu_custom_call.1} parent=31 // pred_check_branch
          %798 = sbr.rel (%p796) target = $region52
        $region51: #{tpu_custom_call.1} parent=31 // pred_region
          %v799 = vld [vmem:[#allocation4] sm:$0xff]
          %v800 = vld [vmem:[#allocation4 + $0x8] sm:$0xff]
          %v801 = vld [vmem:[#allocation4 + $0x10] sm:$0xff]
          %v802 = vld [vmem:[#allocation4 + $0x18] sm:$0xff]
          %v803 = vld [vmem:[#allocation4 + $0x20] sm:$0xff]
          %v804 = vld [vmem:[#allocation4 + $0x28] sm:$0xff]
          %v805 = vld [vmem:[#allocation4 + $0x30] sm:$0xff]
          %v806 = vld [vmem:[#allocation4 + $0x38] sm:$0xff]
          %v807 = vld [vmem:[#allocation3] sm:$0xff]
          %v808 = vld [vmem:[#allocation3 + $0x8] sm:$0xff]
          %v809 = vld [vmem:[#allocation3 + $0x10] sm:$0xff]
          %v810 = vld [vmem:[#allocation3 + $0x18] sm:$0xff]
          %v811 = vld [vmem:[#allocation3 + $0x20] sm:$0xff]
          %v812 = vld [vmem:[#allocation3 + $0x28] sm:$0xff]
          %v813 = vld [vmem:[#allocation3 + $0x30] sm:$0xff]
          %v814 = vld [vmem:[#allocation3 + $0x38] sm:$0xff]
          %v815 = vrcp.pop %v807
          %v816 = vrcp.pop %v808
          %v817 = vrcp.pop %v809
          %v818 = vrcp.pop %v810
          %v819 = vrcp.pop %v811
          %v820 = vrcp.pop %v812
          %v821 = vrcp.pop %v813
          %v822 = vrcp.pop %v814
          %824 = vset.pattern.permute.xlu0 0
          %825 = vperm.xlu0 %824, %v815
          %v826 = vpop.permute.xlu0 %825
          %829 = vset.pattern.permute.xlu0 0
          %830 = vperm.xlu0 %829, %v816
          %v831 = vpop.permute.xlu0 %830
          %834 = vset.pattern.permute.xlu0 0
          %835 = vperm.xlu0 %834, %v817
          %v836 = vpop.permute.xlu0 %835
          %839 = vset.pattern.permute.xlu0 0
          %840 = vperm.xlu0 %839, %v818
          %v841 = vpop.permute.xlu0 %840
          %844 = vset.pattern.permute.xlu0 0
          %845 = vperm.xlu0 %844, %v819
          %v846 = vpop.permute.xlu0 %845
          %849 = vset.pattern.permute.xlu0 0
          %850 = vperm.xlu0 %849, %v820
          %v851 = vpop.permute.xlu0 %850
          %854 = vset.pattern.permute.xlu0 0
          %855 = vperm.xlu0 %854, %v821
          %v856 = vpop.permute.xlu0 %855
          %859 = vset.pattern.permute.xlu0 0
          %860 = vperm.xlu0 %859, %v822
          %v861 = vpop.permute.xlu0 %860
          %v863 = vmul.f32 %v799, %v826
          %v864 = vmul.f32 %v800, %v831
          %v865 = vmul.f32 %v801, %v836
          %v866 = vmul.f32 %v802, %v841
          %v867 = vmul.f32 %v803, %v846
          %v868 = vmul.f32 %v804, %v851
          %v869 = vmul.f32 %v805, %v856
          %v870 = vmul.f32 %v806, %v861
          %871 = vst [vmem:[%s304] sm:$0xff] %v863
          %872 = vst [vmem:[%s304 + $0x8] sm:$0xff] %v864
          %873 = vst [vmem:[%s304 + $0x10] sm:$0xff] %v865
          %874 = vst [vmem:[%s304 + $0x18] sm:$0xff] %v866
          %875 = vst [vmem:[%s304 + $0x20] sm:$0xff] %v867
          %876 = vst [vmem:[%s304 + $0x28] sm:$0xff] %v868
          %877 = vst [vmem:[%s304 + $0x30] sm:$0xff] %v869
          %878 = vst [vmem:[%s304 + $0x38] sm:$0xff] %v870
        $region52: #{tpu_custom_call.1} parent=31 // pred_fallthru
          _
        %s879 = sand.u32 %s136, 1
        %s880 = scalar_lea.sflag [#allocation7], %s879
        %s881 = sand.u32 %s136, 1
        %s882 = smul.addr %s881, 64
        %s883 = scalar_lea.vmem [#allocation11], %s882
        // Predicated region
        $region53: #{tpu_custom_call.1} parent=31 // pred_check
          %p884 = pneg %p146
        $region54: #{tpu_custom_call.1} parent=31 // pred_check_branch
          %886 = sbr.rel (%p884) target = $region56
        $region55: #{tpu_custom_call.1} parent=31 // pred_region
          %s887 = smul.u32 8, %s29
          %889 = vsyncadd %s880, 0
          %s890 = smul.addr %s28, 32
          %s891 = sadd.s32 %s887, %s890
          %s892 = smul.addr %s891, 8
          %s893 = scalar_lea.hbm %s3, %s892
          %s894 = sshll.u32 %s883, 4
          %s895 = int_to_ptr.vmem [resolvable:$true] %s894
          %s896 = sshll.u32 %s893, 4
          %s897 = int_to_ptr.hbm [resolvable:$true] %s896
          %902 = dma.vmem_to_hbm [thread:$0]  %s895, 1024, %s897, %s880, 128, 128, 8
        $region56: #{tpu_custom_call.1} parent=31 // pred_fallthru
          _
      $region32: #{tpu_custom_call.1} parent=5 // pred_fallthru
        _
      %p903 = scmp.le.s32.totalorder 2, %s18
      // Predicated region
      $region57: #{tpu_custom_call.1} parent=5 // pred_check
        %p904 = pneg %p903
      $region58: #{tpu_custom_call.1} parent=5 // pred_check_branch
        %906 = sbr.rel (%p904) target = $region60
      $region59: #{tpu_custom_call.1} parent=5 // pred_region
        %s907 = ssub.s32 %s18, 2
        // Predicated region
        $region61: #{tpu_custom_call.1} parent=59 // pred_check
          %p908 = pneg %p152
        $region62: #{tpu_custom_call.1} parent=59 // pred_check_branch
          %910 = sbr.rel (%p908) target = $region64
        $region63: #{tpu_custom_call.1} parent=59 // pred_region
          %s911 = sand.u32 %s137, 1
          %s912 = scalar_lea.sflag [#allocation7], %s911
          %s913 = sand.u32 %s137, 1
          %s914 = smul.addr %s913, 64
          %s915 = scalar_lea.vmem [#allocation11], %s914
          %917 = dma.done %s912, 1024
        $region64: #{tpu_custom_call.1} parent=59 // pred_fallthru
          _
      $region60: #{tpu_custom_call.1} parent=5 // pred_fallthru
        _
    $region6: #{tpu_custom_call.1} parent=1 // loop_footer
      %s22 = sadd.s32 1, %s18
    $region7: #{tpu_custom_call.1} parent=1 // loop_footer_branch
      %17 = sbr.rel target = $region3
    $region8: #{tpu_custom_call.1} parent=1 // loop_exit
      _
    %918 = vsyncpa [#allocation6], 1
    %s919 = scalar_lea.sflag [#allocation6], 1
    %920 = vsyncpa %s919, 1
    %921 = vsyncpa [#allocation9], 1
    %s922 = scalar_lea.sflag [#allocation9], 1
    %923 = vsyncpa %s922, 1
    %924 = vsyncpa [#allocation7], 1
    %s925 = scalar_lea.sflag [#allocation7], 1
    %926 = vsyncpa %s925, 1

</llo_original>
